<compile_context>
chip_gen: v7x
topology: tpu7x:2x2x1
jax: 0.10.0
libtpu: 0.0.40
codegen_flags: <defaults>
</compile_context>

<pallas_src>
import functools

import jax
import jax.numpy as jnp
import numpy as np
from jax import lax
from jax.experimental import pallas as pl
from jax.experimental.pallas import tpu as pltpu

PAD_INDEX = 0


def _round_up(x, m):
    return ((x + m - 1) // m) * m


def _bag_pool_proj_kernel(words_ref, fused_ref, b_ref, out_ref, *, count_col):
    """One tile of word rows: bag counts -> bag @ fused (embed + count) -> scale + bias."""
    ids = words_ref[...]                                    # [TN, F] int32
    TN, F = ids.shape
    V = fused_ref.shape[0]

    # bag[TN, V] = per-word count of each vocab id among its F pieces.
    # No pad mask needed: row PAD_INDEX of the fused table is all zeros, so pad
    # pieces contribute nothing to either the embedding columns or the count column.
    # int32 accumulation, single cast after the loop; (1, V) iota keeps vreg pressure low.
    iota_v = lax.broadcasted_iota(jnp.int32, (1, V), 1)     # [1, V]
    bag = jnp.zeros((TN, V), jnp.int32)
    for f in range(F):                                      # short static loop over pieces
        bag += (ids[:, f:f + 1] == iota_v).astype(jnp.int32)
    bag = bag.astype(jnp.float32)

    # One MXU matmul yields both the summed projected embedding (cols < E) and the
    # per-word non-pad piece count (the ones column at `count_col`).
    acc = jnp.dot(bag, fused_ref[...], preferred_element_type=jnp.float32)  # [TN, Ep]
    cnt = acc[:, count_col:count_col + 1]                   # [TN, 1] non-pad piece count
    inv = pl.reciprocal(jnp.maximum(cnt, 1.0), approx=False)
    out_ref[...] = (acc * inv + b_ref[...]).astype(out_ref.dtype)


def prepare_pretrained_params(table, w_proj, b_proj):
    """Fold the Linear into the embedding table once (weights are static).

    Returns:
      fused_p: [V, Ep] f32, Ep = round_up(E + 1, 128); cols [0,E) = table @ w_proj,
               col E = 1.0 (count column), row PAD_INDEX zeroed.
      b_p:     [1, Ep] f32, b_proj zero-padded.
    """
    table = table.astype(jnp.float32)
    w_proj = w_proj.astype(jnp.float32)
    V, _ = table.shape
    E = w_proj.shape[1]
    Ep = _round_up(E + 1, 128)                              # +1 for the count column

    fused = jnp.dot(table, w_proj)                          # [V, E] (pool & proj are linear)
    fused_p = jnp.zeros((V, Ep), jnp.float32)
    fused_p = fused_p.at[:, :E].set(fused)
    fused_p = fused_p.at[:, E].set(1.0)                     # ones column -> piece count
    fused_p = fused_p.at[PAD_INDEX, :].set(0.0)             # pad pieces contribute nothing
    b_p = jnp.pad(b_proj.astype(jnp.float32), (0, Ep - E)).reshape(1, Ep)
    return fused_p, b_p


@functools.partial(jax.jit, static_argnames=("embed_size", "tile_n"))
def pretrained_embedding_forward(words, fused_p, b_p, *, embed_size, tile_n=256):
    """words: [B,S,F] int ids; fused_p/b_p from prepare_pretrained_params."""
    B, S, F = words.shape
    V, Ep = fused_p.shape
    E = embed_size
    N = B * S

    # Row tiling: large tiles amortize per-grid-step overhead and the re-presented
    # constant blocks, but keep >= 2 grid steps when there is enough work so the
    # "parallel" axis can shard across both v7x TensorCores.
    Nr = _round_up(N, 8)
    if Nr >= 16:
        tile_n = max(8, min(tile_n, _round_up((Nr + 1) // 2, 8)))
    else:
        tile_n = max(8, min(tile_n, Nr))
    Np = _round_up(N, tile_n)

    words2d = jnp.pad(words.reshape(N, F).astype(jnp.int32),
                      ((0, Np - N), (0, 0)), constant_values=PAD_INDEX)

    out = pl.pallas_call(
        functools.partial(_bag_pool_proj_kernel, count_col=E),
        out_shape=jax.ShapeDtypeStruct((Np, Ep), jnp.float32),
        grid_spec=pltpu.PrefetchScalarGridSpec(
            num_scalar_prefetch=0,
            grid=(Np // tile_n,),
            in_specs=[
                pl.BlockSpec((tile_n, F), lambda i: (i, 0)),       # word-piece ids tile
                # Grid-invariant constants: single-buffered (halves their VMEM).
                pl.BlockSpec((V, Ep), lambda i: (0, 0),
                             pipeline_mode=pl.Buffered(1)),        # fused table @ W (+count col)
                pl.BlockSpec((1, Ep), lambda i: (0, 0),
                             pipeline_mode=pl.Buffered(1)),        # projection bias
            ],
            out_specs=pl.BlockSpec((tile_n, Ep), lambda i: (i, 0)),
        ),
        compiler_params=pltpu.CompilerParams(dimension_semantics=("parallel",)),
    )(words2d, fused_p, b_p)

    return out[:N, :E].reshape(B, S, E)


def _reference(words, table, w_proj, b_proj):
    """Plain-JAX reference for the same semantics."""
    valid = (words != PAD_INDEX)                                 # [B,S,F]
    tok = table[words]                                           # [B,S,F,H]
    tok = tok * valid[..., None].astype(jnp.float32)
    cnt = jnp.sum(valid, axis=-1, keepdims=True).astype(jnp.float32)
    pooled = jnp.sum(tok, axis=2) / jnp.maximum(cnt, 1.0)        # [B,S,H]
    return pooled @ w_proj + b_proj                              # [B,S,E]


if __name__ == "__main__":
    B, S, F = 2, 8, 4          # batch, seq_len (words), fix_len (subword pieces)
    V, H, E = 64, 32, 16       # vocab, transformer hidden_size, embed_size

    key = jax.random.PRNGKey(0)
    k_ids, k_drop, k_tab, k_w, k_b = jax.random.split(key, 5)

    # deterministic "pretrained" parameters
    table = 0.02 * jax.random.normal(k_tab, (V, H), dtype=jnp.float32)
    w_proj = jax.random.normal(k_w, (H, E), dtype=jnp.float32) / jnp.sqrt(jnp.float32(H))
    b_proj = 0.01 * jax.random.normal(k_b, (E,), dtype=jnp.float32)

    # deterministic input ids in [1, V), with some pad pieces and one all-pad word
    words = jax.random.randint(k_ids, (B, S, F), 1, V, dtype=jnp.int32)
    drop = jax.random.uniform(k_drop, (B, S, F)) < 0.3
    words = jnp.where(drop, PAD_INDEX, words)
    words = words.at[:, :, 0].set(jnp.maximum(words[:, :, 0], 1))  # each word has >=1 piece...
    words = words.at[0, S - 1, :].set(PAD_INDEX)                   # ...except this padded slot

    # Precompute the fused (table @ W) once per "model"; run the kernel per call.
    fused_p, b_p = prepare_pretrained_params(table, w_proj, b_proj)
    out = pretrained_embedding_forward(words, fused_p, b_p, embed_size=E)
    out = jax.block_until_ready(out)

    ref = _reference(words, table, w_proj, b_proj)
    assert out.shape == (B, S, E)
    np.testing.assert_allclose(np.asarray(out), np.asarray(ref), rtol=1e-5, atol=1e-5)

    print("KERNEL_OK")
</pallas_src>

<mosaic_0001>
module attributes {stable_mosaic.version = 11 : i64} {
  func.func @_bag_pool_proj_kernel(%arg0: i32, %arg1: memref<8x4xi32, #tpu.memory_space<vmem>>, %arg2: memref<64x128xf32, #tpu.memory_space<vmem>>, %arg3: memref<1x128xf32, #tpu.memory_space<vmem>>, %arg4: memref<8x128xf32, #tpu.memory_space<vmem>>) attributes {dimension_semantics = [#tpu.dimension_semantics<parallel>], iteration_bounds = array<i64: 2>, scalar_prefetch = 0 : i64, scratch_operands = 0 : i64, tpu.core_type = #tpu.core_type<tc>, window_params = [{transform_indices = @transform_0, window_bounds = array<i64: 8, 4>}, {pipeline_mode = #tpu.pipeline_mode<synchronous>, transform_indices = @transform_1, window_bounds = array<i64: 64, 128>}, {pipeline_mode = #tpu.pipeline_mode<synchronous>, transform_indices = @transform_2, window_bounds = array<i64: 1, 128>}, {transform_indices = @transform_3, window_bounds = array<i64: 8, 128>}]} {
    %c0 = arith.constant 0 : index
    %c0_0 = arith.constant 0 : index
    %0 = vector.load %arg1[%c0, %c0_0] : memref<8x4xi32, #tpu.memory_space<vmem>>, vector<8x4xi32>
    %1 = tpu.iota {dimensions = array<i32: 1>} : vector<1x64xi32>
    %c0_i32 = arith.constant 0 : i32
    %2 = vector.broadcast %c0_i32 : i32 to vector<8x64xi32>
    %3 = vector.extract_strided_slice %0 {offsets = [0, 0], sizes = [8, 1], strides = [1, 1]} : vector<8x4xi32> to vector<8x1xi32>
    %4 = vector.broadcast %3 : vector<8x1xi32> to vector<8x64xi32>
    %5 = vector.broadcast %1 : vector<1x64xi32> to vector<8x64xi32>
    %6 = arith.cmpi eq, %4, %5 : vector<8x64xi32>
    %7 = arith.extui %6 : vector<8x64xi1> to vector<8x64xi32>
    %8 = arith.addi %2, %7 : vector<8x64xi32>
    %9 = vector.extract_strided_slice %0 {offsets = [0, 1], sizes = [8, 1], strides = [1, 1]} : vector<8x4xi32> to vector<8x1xi32>
    %10 = vector.broadcast %9 : vector<8x1xi32> to vector<8x64xi32>
    %11 = vector.broadcast %1 : vector<1x64xi32> to vector<8x64xi32>
    %12 = arith.cmpi eq, %10, %11 : vector<8x64xi32>
    %13 = arith.extui %12 : vector<8x64xi1> to vector<8x64xi32>
    %14 = arith.addi %8, %13 : vector<8x64xi32>
    %15 = vector.extract_strided_slice %0 {offsets = [0, 2], sizes = [8, 1], strides = [1, 1]} : vector<8x4xi32> to vector<8x1xi32>
    %16 = vector.broadcast %15 : vector<8x1xi32> to vector<8x64xi32>
    %17 = vector.broadcast %1 : vector<1x64xi32> to vector<8x64xi32>
    %18 = arith.cmpi eq, %16, %17 : vector<8x64xi32>
    %19 = arith.extui %18 : vector<8x64xi1> to vector<8x64xi32>
    %20 = arith.addi %14, %19 : vector<8x64xi32>
    %21 = vector.extract_strided_slice %0 {offsets = [0, 3], sizes = [8, 1], strides = [1, 1]} : vector<8x4xi32> to vector<8x1xi32>
    %22 = vector.broadcast %21 : vector<8x1xi32> to vector<8x64xi32>
    %23 = vector.broadcast %1 : vector<1x64xi32> to vector<8x64xi32>
    %24 = arith.cmpi eq, %22, %23 : vector<8x64xi32>
    %25 = arith.extui %24 : vector<8x64xi1> to vector<8x64xi32>
    %26 = arith.addi %20, %25 : vector<8x64xi32>
    %27 = arith.sitofp %26 : vector<8x64xi32> to vector<8x64xf32>
    %c0_1 = arith.constant 0 : index
    %c0_2 = arith.constant 0 : index
    %28 = vector.load %arg2[%c0_1, %c0_2] : memref<64x128xf32, #tpu.memory_space<vmem>>, vector<64x128xf32>
    %cst = arith.constant dense<0.000000e+00> : vector<8x128xf32>
    %29 = tpu.matmul %27, %28, %cst {dimension_numbers = #tpu.dot_dimension_numbers<[1], [0], [0], [1], [0, 0, 1, 1], [], []>} : vector<8x64xf32>, vector<64x128xf32>, vector<8x128xf32> -> vector<8x128xf32>
    %30 = vector.extract_strided_slice %29 {offsets = [0, 16], sizes = [8, 1], strides = [1, 1]} : vector<8x128xf32> to vector<8x1xf32>
    %cst_3 = arith.constant 1.000000e+00 : f32
    %31 = vector.broadcast %cst_3 : f32 to vector<8x1xf32>
    %32 = arith.maximumf %30, %31 : vector<8x1xf32>
    %33 = tpu.reciprocal %32 : vector<8x1xf32> -> vector<8x1xf32>
    %34 = vector.broadcast %33 : vector<8x1xf32> to vector<8x128xf32>
    %35 = arith.mulf %29, %34 : vector<8x128xf32>
    %c0_4 = arith.constant 0 : index
    %c0_5 = arith.constant 0 : index
    %36 = vector.load %arg3[%c0_4, %c0_5] : memref<1x128xf32, #tpu.memory_space<vmem>>, vector<1x128xf32>
    %37 = vector.broadcast %36 : vector<1x128xf32> to vector<8x128xf32>
    %38 = arith.addf %35, %37 : vector<8x128xf32>
    %c0_6 = arith.constant 0 : index
    %c0_7 = arith.constant 0 : index
    %39 = vector.load %arg4[%c0_6, %c0_7] : memref<8x128xf32, #tpu.memory_space<vmem>>, vector<8x128xf32>
    tpu.vector_store %arg4[%c0_6, %c0_7], %38 {strides = array<i32>} : memref<8x128xf32, #tpu.memory_space<vmem>>, vector<8x128xf32>,
    return
  }
  func.func @transform_0(%arg0: i32) -> (i32, i32) {
    %c0_i32 = arith.constant 0 : i32
    %c0_i32_0 = arith.constant 0 : i32
    return %arg0, %c0_i32 : i32, i32
  }
  func.func @transform_1(%arg0: i32) -> (i32, i32) {
    %c0_i32 = arith.constant 0 : i32
    %c0_i32_0 = arith.constant 0 : i32
    %c0_i32_1 = arith.constant 0 : i32
    return %c0_i32, %c0_i32_0 : i32, i32
  }
  func.func @transform_2(%arg0: i32) -> (i32, i32) {
    %c0_i32 = arith.constant 0 : i32
    %c0_i32_0 = arith.constant 0 : i32
    %c0_i32_1 = arith.constant 0 : i32
    return %c0_i32, %c0_i32_0 : i32, i32
  }
  func.func @transform_3(%arg0: i32) -> (i32, i32) {
    %c0_i32 = arith.constant 0 : i32
    %c0_i32_0 = arith.constant 0 : i32
    return %arg0, %c0_i32 : i32, i32
  }
}

</mosaic_0001>

<llo_original>
// kernel: pretrained_embedding_forward.1
$region0: #{pretrained_embedding_forward.1}
  #allocation0 [shape = 'u32[]', space=smem, size = 0x4, offset = 0x4, fixed_abs, tag = 'smem constant byte address 0x4 - core index']
  #allocation1 [shape = 'u32[144,128]{1,0:T(1,128)}', space=vmem, size = 0x12000, scoped, tag = 'internal scratch']
  %s0 = inlined_call_operand.vmem [shape: s32[16,4], index: 0, kind: input, shape index: {}]
  %s1 = inlined_call_operand.hbm [shape: f32[64,128], index: 1, kind: input, shape index: {}]
  %s2 = inlined_call_operand.vmem [shape: f32[1,128], index: 2, kind: input, shape index: {}]
  %s3 = inlined_call_operand.vmem [shape: f32[16,128], index: 3, kind: output, shape index: {}]
  %s4 = sld [smem:[#allocation0]]
  $region49: #{pretrained_embedding_forward.1} parent=0
    _
  %s6 = ssub.s32 1, %s4
  %s7 = scalar_select 0, %s6, %s4
  $region1: #{pretrained_embedding_forward.1} parent=0
    #allocation2 [shape = 'u8[32768]{0}', space=vmem, size = 0x8000, scoped, tag = 'input window, operand 1, single buffered']
    #allocation3 [shape = 's32[2]{0}', space=sflag, size = 0x8, scoped, tag = 'scoped memory for pretrained_embedding_forward.1']
    %8 = vsyncpa [#allocation3], 0
    loop: start=0, step=1, limit=4
    $region2: #{pretrained_embedding_forward.1} parent=1 // loop_pre_header
      _
    $region3: #{pretrained_embedding_forward.1} parent=1 // loop_header
      %s10 = sphi 0, %s14
      %p11 = scmp.ge.s32.totalorder %s10, 4
      %s20 = sphi 0, %s22
      %s23 = sphi 0, %s20
      %s24 = sphi 0, %s23
      %s40 = sphi 0, %s24
      %s44 = sphi 0, %s44
      %s46 = sphi 0, %s44
      %s47 = sphi 0, %s46
      %s61 = sphi 0, %s47
      %s65 = sphi 0, %s65
      %s67 = sphi 0, %s65
      %s68 = sphi 0, %s67
      %s82 = sphi 0, %s68
      %s88 = sphi 0, %s90
      %s91 = sphi 0, %s88
      %s92 = sphi 0, %s91
      %s108 = sphi 0, %s92
    $region4: #{pretrained_embedding_forward.1} parent=1 // loop_header_branch
      %13 = sbr.rel (%p11) target = $region8
    $region5: #{pretrained_embedding_forward.1} parent=1 // loop_body
      %s15 = ssub.s32 %s10, 1
      %s16 = ssub.s32 %s10, 2
      %s17 = sadd.s32 %s10, 1
      %s18 = ssub.s32 %s10, %s17
      %p19 = scmp.eq.s32.totalorder %s18, 0
      %s21 = sadd.s32 %s20, 1
      %s22 = scalar_select %p19, %s20, %s21
      %p25 = pneg %p19
      %p26 = scmp.eq.s32.totalorder %s10, 1
      %p27 = por %p25, %p26
      %p28 = scmp.ne.s32.totalorder %s20, %s23
      %p29 = scmp.eq.s32.totalorder %s10, 0
      %p30 = por %p28, %p29
      %p31 = scmp.ne.s32.totalorder %s20, %s23
      %p32 = scmp.eq.s32.totalorder %s15, 1
      %p33 = por %p31, %p32
      %p34 = scmp.ne.s32.totalorder %s23, %s24
      %p35 = scmp.eq.s32.totalorder %s15, 0
      %p36 = por %p34, %p35
      %p37 = scmp.ne.s32.totalorder %s23, %s24
      %p38 = scmp.eq.s32.totalorder %s16, 1
      %p39 = por %p37, %p38
      %p41 = scmp.ne.s32.totalorder %s24, %s40
      %p42 = scmp.eq.s32.totalorder %s16, 0
      %p43 = por %p41, %p42
      %s45 = sadd.s32 %s44, 1
      %p48 = scmp.eq.s32.totalorder %s10, 1
      %p49 = scmp.ne.s32.totalorder %s44, %s46
      %p50 = scmp.eq.s32.totalorder %s10, 0
      %p51 = por %p49, %p50
      %p52 = scmp.ne.s32.totalorder %s44, %s46
      %p53 = scmp.eq.s32.totalorder %s15, 1
      %p54 = por %p52, %p53
      %p55 = scmp.ne.s32.totalorder %s46, %s47
      %p56 = scmp.eq.s32.totalorder %s15, 0
      %p57 = por %p55, %p56
      %p58 = scmp.ne.s32.totalorder %s46, %s47
      %p59 = scmp.eq.s32.totalorder %s16, 1
      %p60 = por %p58, %p59
      %p62 = scmp.ne.s32.totalorder %s47, %s61
      %p63 = scmp.eq.s32.totalorder %s16, 0
      %p64 = por %p62, %p63
      %s66 = sadd.s32 %s65, 1
      %p69 = scmp.eq.s32.totalorder %s10, 1
      %p70 = scmp.ne.s32.totalorder %s65, %s67
      %p71 = scmp.eq.s32.totalorder %s10, 0
      %p72 = por %p70, %p71
      %p73 = scmp.ne.s32.totalorder %s65, %s67
      %p74 = scmp.eq.s32.totalorder %s15, 1
      %p75 = por %p73, %p74
      %p76 = scmp.ne.s32.totalorder %s67, %s68
      %p77 = scmp.eq.s32.totalorder %s15, 0
      %p78 = por %p76, %p77
      %p79 = scmp.ne.s32.totalorder %s67, %s68
      %p80 = scmp.eq.s32.totalorder %s16, 1
      %p81 = por %p79, %p80
      %p83 = scmp.ne.s32.totalorder %s68, %s82
      %p84 = scmp.eq.s32.totalorder %s16, 0
      %p85 = por %p83, %p84
      %s86 = ssub.s32 %s10, %s17
      %p87 = scmp.eq.s32.totalorder %s86, 0
      %s89 = sadd.s32 %s88, 1
      %s90 = scalar_select %p87, %s88, %s89
      %p93 = pneg %p87
      %p94 = scmp.eq.s32.totalorder %s10, 1
      %p95 = por %p93, %p94
      %p96 = scmp.ne.s32.totalorder %s88, %s91
      %p97 = scmp.eq.s32.totalorder %s10, 0
      %p98 = por %p96, %p97
      %p99 = scmp.ne.s32.totalorder %s88, %s91
      %p100 = scmp.eq.s32.totalorder %s15, 1
      %p101 = por %p99, %p100
      %p102 = scmp.ne.s32.totalorder %s91, %s92
      %p103 = scmp.eq.s32.totalorder %s15, 0
      %p104 = por %p102, %p103
      %p105 = scmp.ne.s32.totalorder %s91, %s92
      %p106 = scmp.eq.s32.totalorder %s16, 1
      %p107 = por %p105, %p106
      %p109 = scmp.ne.s32.totalorder %s92, %s108
      %p110 = scmp.eq.s32.totalorder %s16, 0
      %p111 = por %p109, %p110
      %p112 = scmp.le.s32.totalorder 1, %s10
      %p113 = scmp.lt.s32.totalorder %s10, 3
      %p114 = pnand %p112, %p113
      %p115 = pneg %p114
      // Predicated region
      $region9: #{pretrained_embedding_forward.1} parent=5 // pred_check
        _
      $region10: #{pretrained_embedding_forward.1} parent=5 // pred_check_branch
        %117 = sbr.rel (%p114) target = $region12
      $region11: #{pretrained_embedding_forward.1} parent=5 // pred_region
        %s118 = ssub.s32 %s10, 1
        // Predicated region
        $region13: #{pretrained_embedding_forward.1} parent=11 // pred_check
          %p119 = pneg %p57
        $region14: #{pretrained_embedding_forward.1} parent=11 // pred_check_branch
          %121 = sbr.rel (%p119) target = $region16
        $region15: #{pretrained_embedding_forward.1} parent=11 // pred_region
          %s123 = ssub.s32 1024, 1024
          %124 = vsyncadd [#allocation3], %s123
          %s125 = sshll.u32 [#allocation2], 4
          %s126 = int_to_ptr.vmem [resolvable:$true] %s125
          %131 = dma.hbm_to_vmem [thread:$0]  %s1, 1024, %s126, [#allocation3], 128, 128, 8
        $region16: #{pretrained_embedding_forward.1} parent=11 // pred_fallthru
          _
        // Predicated region
        $region17: #{pretrained_embedding_forward.1} parent=11 // pred_check
          %p132 = pneg %p78
        $region18: #{pretrained_embedding_forward.1} parent=11 // pred_check_branch
          %134 = sbr.rel (%p132) target = $region20
        $region19: #{pretrained_embedding_forward.1} parent=11 // pred_region
          _
        $region20: #{pretrained_embedding_forward.1} parent=11 // pred_fallthru
          _
      $region12: #{pretrained_embedding_forward.1} parent=5 // pred_fallthru
        _
      %p135 = scmp.lt.s32.totalorder %s10, 2
      // Predicated region
      $region21: #{pretrained_embedding_forward.1} parent=5 // pred_check
        %p136 = pneg %p135
      $region22: #{pretrained_embedding_forward.1} parent=5 // pred_check_branch
        %138 = sbr.rel (%p136) target = $region24
      $region23: #{pretrained_embedding_forward.1} parent=5 // pred_region
        // Predicated region
        $region25: #{pretrained_embedding_forward.1} parent=23 // pred_check
          %p139 = pneg %p30
        $region26: #{pretrained_embedding_forward.1} parent=23 // pred_check_branch
          %141 = sbr.rel (%p139) target = $region28
        $region27: #{pretrained_embedding_forward.1} parent=23 // pred_region
          %p142 = scmp.lt.s32.totalorder %s10, 1
          %s143 = scalar_select %p142, %s10, 1
          %s144 = smul.addr %s143, 8
          %s145 = scalar_lea.vmem %s0, %s144
        $region28: #{pretrained_embedding_forward.1} parent=23 // pred_fallthru
          _
      $region24: #{pretrained_embedding_forward.1} parent=5 // pred_fallthru
        _
      %p146 = scmp.le.s32.totalorder 1, %s10
      %p147 = scmp.lt.s32.totalorder %s10, 3
      %p148 = pnand %p146, %p147
      %p149 = pneg %p148
      // Predicated region
      $region29: #{pretrained_embedding_forward.1} parent=5 // pred_check
        _
      $region30: #{pretrained_embedding_forward.1} parent=5 // pred_check_branch
        %151 = sbr.rel (%p148) target = $region32
      $region31: #{pretrained_embedding_forward.1} parent=5 // pred_region
        %s152 = ssub.s32 %s10, 1
        // Predicated region
        $region33: #{pretrained_embedding_forward.1} parent=31 // pred_check
          %p153 = pneg %p57
        $region34: #{pretrained_embedding_forward.1} parent=31 // pred_check_branch
          %155 = sbr.rel (%p153) target = $region36
        $region35: #{pretrained_embedding_forward.1} parent=31 // pred_region
          %156 = dma.done [#allocation3], 1024
        $region36: #{pretrained_embedding_forward.1} parent=31 // pred_fallthru
          _
        %p157 = scmp.lt.s32.totalorder %s15, 1
        %s158 = scalar_select %p157, %s15, 1
        %s159 = smul.addr %s158, 8
        %s160 = scalar_lea.vmem %s0, %s159
        %p161 = pneg %p36
        %p162 = pneg %p33
        %p163 = pneg %p57
        %p164 = pneg %p54
        %p165 = pneg %p78
        %p166 = pneg %p75
        %p167 = pneg %p104
        %p168 = pneg %p101
        %p169 = scmp.lt.s32.totalorder %s15, 1
        %s170 = scalar_select %p169, %s15, 1
        %s171 = smul.addr %s170, 8
        %s172 = scalar_lea.vmem %s3, %s171
        %p173 = scmp.lt.s32.totalorder %s15, 1
        %s174 = scalar_select %p173, %s15, 1
        %s175 = smul.addr %s174, 8
        %s176 = scalar_lea.vmem %s0, %s175
        %p177 = scmp.lt.s32.totalorder %s15, 1
        %s178 = scalar_select %p177, %s15, 1
        %s179 = smul.addr %s178, 8
        %s180 = scalar_lea.vmem %s3, %s179
        %v181 = vld [vmem:[%s176] sm:$0xff]
        %v182 = vlaneseq
        %v183 = vand.u32 %v182, 127
        %184 = vset.pattern.permute.xlu0 0
        %185 = vperm.xlu0 %184, %v181
        %v186 = vpop.permute.xlu0 %185
        %vm187 = vcmp.eq.s32.totalorder %v186, %v183
        %v188 = vsel %vm187, 1, 0
        %189 = vset.pattern.permute.xlu0 1
        %190 = vperm.xlu0 %189, %v181
        %v191 = vpop.permute.xlu0 %190
        %vm192 = vcmp.eq.s32.totalorder %v191, %v183
        %v193 = vsel %vm192, 1, 0
        %v194 = vadd.s32 %v188, %v193
        %195 = vset.pattern.permute.xlu0 2
        %196 = vperm.xlu0 %195, %v181
        %v197 = vpop.permute.xlu0 %196
        %vm198 = vcmp.eq.s32.totalorder %v197, %v183
        %v199 = vsel %vm198, 1, 0
        %v200 = vadd.s32 %v194, %v199
        %201 = vset.pattern.permute.xlu0 3
        %202 = vperm.xlu0 %201, %v181
        %v203 = vpop.permute.xlu0 %202
        %vm204 = vcmp.eq.s32.totalorder %v203, %v183
        %v205 = vsel %vm204, 1, 0
        %v206 = vadd.s32 %v200, %v205
        %v207 = vcvt.s32.f32 %v206
        %v208 = vld [vmem:[#allocation2] sm:$0xff]
        %v209 = vld [vmem:[#allocation2 + $0x8] sm:$0xff]
        %v210 = vld [vmem:[#allocation2 + $0x10] sm:$0xff]
        %v211 = vld [vmem:[#allocation2 + $0x18] sm:$0xff]
        %v212 = vld [vmem:[#allocation2 + $0x20] sm:$0xff]
        %v213 = vld [vmem:[#allocation2 + $0x28] sm:$0xff]
        %v214 = vld [vmem:[#allocation2 + $0x30] sm:$0xff]
        %v215 = vld [vmem:[#allocation2 + $0x38] sm:$0xff]
        %vm216 = vcmask 523264
        %v218 = vsel %vm216, %v207, 0
        %220 = vmatprep.subr.mxu0 0.0
        %221 = vmatpush1.msra.mxu0 %v208
        %222 = vmatprep.subr.mxu0 0.0
        %223 = vmatpush1.msra.mxu0 %v209
        %224 = vmatprep.subr.mxu0 0.0
        %225 = vmatpush1.msra.mxu0 %v210
        %226 = vmatprep.subr.mxu0 0.0
        %227 = vmatpush1.msra.mxu0 %v211
        %228 = vmatprep.subr.mxu0 0.0
        %229 = vmatpush1.msra.mxu0 %v212
        %230 = vmatprep.subr.mxu0 0.0
        %231 = vmatpush1.msra.mxu0 %v213
        %232 = vmatprep.subr.mxu0 0.0
        %233 = vmatpush1.msra.mxu0 %v214
        %234 = vmatprep.subr.mxu0 0.0
        %235 = vmatpush1.msra.mxu0 %v215
        %236 = vmatprep.subr.mxu0 0.0
        %237 = vmatpush1.msra.mxu0 0.0
        %238 = vmatprep.subr.mxu0 0.0
        %239 = vmatpush1.msra.mxu0 0.0
        %240 = vmatprep.subr.mxu0 0.0
        %241 = vmatpush1.msra.mxu0 0.0
        %242 = vmatprep.subr.mxu0 0.0
        %243 = vmatpush1.msra.mxu0 0.0
        %244 = vmatprep.subr.mxu0 0.0
        %245 = vmatpush1.msra.mxu0 0.0
        %246 = vmatprep.subr.mxu0 0.0
        %247 = vmatpush1.msra.mxu0 0.0
        %248 = vmatprep.subr.mxu0 0.0
        %249 = vmatpush1.msra.mxu0 0.0
        %250 = vmatprep.subr.mxu0 0.0
        %251 = vmatpush1.msra.mxu0 0.0
        %252 = vmatprep.subr.mxu0 0.0
        %253 = vmatpush1.msra.mxu0 0.0
        %254 = vmatprep.subr.mxu0 0.0
        %255 = vmatpush1.msra.mxu0 0.0
        %256 = vmatprep.subr.mxu0 0.0
        %257 = vmatpush1.msra.mxu0 0.0
        %258 = vmatprep.subr.mxu0 0.0
        %259 = vmatpush1.msra.mxu0 0.0
        %260 = vmatprep.subr.mxu0 0.0
        %261 = vmatpush1.msra.mxu0 0.0
        %262 = vmatprep.subr.mxu0 0.0
        %263 = vmatpush1.msra.mxu0 0.0
        %264 = vmatprep.subr.mxu0 0.0
        %265 = vmatpush1.msra.mxu0 0.0
        %266 = vmatprep.subr.mxu0 0.0
        %267 = vmatpush1.msra.mxu0 0.0
        %268 = vmatprep.subr.mxu0 0.0
        %269 = vmatpush1.msra.mxu0 0.0
        %270 = vmatprep.subr.mxu0 0.0
        %271 = vmatpush1.msra.mxu0 0.0
        %272 = vmatprep.subr.mxu0 0.0
        %273 = vmatpush1.msra.mxu0 0.0
        %274 = vmatprep.subr.mxu0 0.0
        %275 = vmatpush1.msra.mxu0 0.0
        %276 = vmatprep.subr.mxu0 0.0
        %277 = vmatpush1.msra.mxu0 0.0
        %278 = vmatprep.subr.mxu0 0.0
        %279 = vmatpush1.msra.mxu0 0.0
        %280 = vmatprep.subr.mxu0 0.0
        %281 = vmatpush1.msra.mxu0 0.0
        %282 = vmatprep.subr.mxu0 0.0
        %283 = vmatpush1.msra.mxu0 0.0
        %284 = vmatprep.mubr.f32.mxu0 0.0
        %285 = vmatmul.mubr.f32.gmra.mrb[0].mxu0 %v218
        %v286 = vpop.f32.mrb[0].mxu0
        %v287 = vadd.f32 0.0, %v286
        %v288 = vpop.f32.mrb[0].mxu0
        %289 = vdwg.mxu0
        %v290 = vmax.f32 %v287, 1.0
        %v291 = vrcp.pop %v290
        %293 = vset.pattern.permute.xlu0 16
        %294 = vperm.xlu0 %293, %v291
        %v295 = vpop.permute.xlu0 %294
        %v297 = vmul.f32 %v287, %v295
        %v298 = vld [vmem:[%s2] sm:$0x1]
        %v300 = vlaneseq
        %v301 = vshrl.u32 %v300, 7
        %v302 = vsub.s32 0, %v301
        %v303 = vrot.slane %v298, %v302
        %v305 = vadd.f32 %v297, %v303
        %306 = vst [vmem:[%s180] sm:$0xff] %v305
        %p307 = scmp.lt.s32.totalorder %s15, 1
        %s308 = scalar_select %p307, %s15, 1
        %s309 = smul.addr %s308, 8
        %s310 = scalar_lea.vmem %s3, %s309
        // Predicated region
        $region37: #{pretrained_embedding_forward.1} parent=31 // pred_check
          %p311 = pneg %p101
        $region38: #{pretrained_embedding_forward.1} parent=31 // pred_check_branch
          %313 = sbr.rel (%p311) target = $region40
        $region39: #{pretrained_embedding_forward.1} parent=31 // pred_region
          _
        $region40: #{pretrained_embedding_forward.1} parent=31 // pred_fallthru
          _
      $region32: #{pretrained_embedding_forward.1} parent=5 // pred_fallthru
        _
      %p314 = scmp.le.s32.totalorder 2, %s10
      // Predicated region
      $region41: #{pretrained_embedding_forward.1} parent=5 // pred_check
        %p315 = pneg %p314
      $region42: #{pretrained_embedding_forward.1} parent=5 // pred_check_branch
        %317 = sbr.rel (%p315) target = $region44
      $region43: #{pretrained_embedding_forward.1} parent=5 // pred_region
        %s318 = ssub.s32 %s10, 2
        // Predicated region
        $region45: #{pretrained_embedding_forward.1} parent=43 // pred_check
          %p319 = pneg %p107
        $region46: #{pretrained_embedding_forward.1} parent=43 // pred_check_branch
          %321 = sbr.rel (%p319) target = $region48
        $region47: #{pretrained_embedding_forward.1} parent=43 // pred_region
          %p322 = scmp.lt.s32.totalorder %s16, 1
          %s323 = scalar_select %p322, %s16, 1
          %s324 = smul.addr %s323, 8
          %s325 = scalar_lea.vmem %s3, %s324
        $region48: #{pretrained_embedding_forward.1} parent=43 // pred_fallthru
          _
      $region44: #{pretrained_embedding_forward.1} parent=5 // pred_fallthru
        _
    $region6: #{pretrained_embedding_forward.1} parent=1 // loop_footer
      %s14 = sadd.s32 1, %s10
    $region7: #{pretrained_embedding_forward.1} parent=1 // loop_footer_branch
      %9 = sbr.rel target = $region3
    $region8: #{pretrained_embedding_forward.1} parent=1 // loop_exit
      _
    %326 = vsyncpa [#allocation3], 1
    %s327 = scalar_lea.sflag [#allocation3], 1
    %328 = vsyncpa %s327, 1

</llo_original>
